<compile_context>
chip_gen: v7x
topology: tpu7x:2x2x1
jax: 0.10.0
libtpu: 0.0.40
codegen_flags: <defaults>
</compile_context>

<pallas_src>
import functools

import jax
import jax.numpy as jnp
from jax.experimental import pallas as pl
from jax.experimental.pallas import tpu as pltpu

_NEG_BIG = float(jnp.finfo(jnp.float32).min) / 2.0  # ~-1.7e38; a - a == 0 stays exact


def _round_up(x, m):
    return (x + m - 1) // m * m


def _ce_loss_kernel(logits_ref, tgt_ref, out_ref, m_sc, l_sc, *, num_classes):
    # logits_ref: (bn, bc) native float dtype, VMEM tile
    # tgt_ref:    (bn, 1)  f32 target-class logit (gathered wrapper-side)
    # out_ref:    (bn, 1)  f32 per-row loss (written only on the last class step)
    # m_sc/l_sc:  (bn, 128) f32 lane-resident running max / running sum of exp
    j = pl.program_id(1)
    n_j = pl.num_programs(1)
    bn, bc = logits_ref.shape
    nchunks = bc // 128
    n_col_blocks = -(-num_classes // bc)          # static
    padded_cols = n_col_blocks * bc > num_classes  # static

    @pl.when(j == 0)
    def _init():
        m_sc[...] = jnp.full_like(m_sc, _NEG_BIG)
        l_sc[...] = jnp.zeros_like(l_sc)

    x = logits_ref[...].astype(jnp.float32)        # (bn, bc), single cast

    lane = (jax.lax.broadcasted_iota(jnp.int32, (bn, 128), 1)
            if padded_cols else None)
    col_base = j * bc

    def chunk(k):
        ck = x[:, k * 128:(k + 1) * 128]           # 128-lane-aligned slice (no relayout)
        # Only chunks of the last class block that can spill past C ever need a mask;
        # that decision is static per chunk, the comparison itself uses dynamic j.
        if (n_col_blocks - 1) * bc + (k + 1) * 128 > num_classes:
            ck = jnp.where(col_base + k * 128 + lane < num_classes, ck, _NEG_BIG)
        return ck

    chunks = [chunk(k) for k in range(nchunks)]

    # Lane-resident online logsumexp update (pure VPU elementwise; no per-tile XLU work).
    m_prev = m_sc[...]
    m_new = m_prev
    for ck in chunks:
        m_new = jnp.maximum(m_new, ck)
    l_acc = l_sc[...] * jnp.exp(m_prev - m_new)
    for ck in chunks:
        l_acc = l_acc + jnp.exp(ck - m_new)
    m_sc[...] = m_new
    l_sc[...] = l_acc

    @pl.when(j == n_j - 1)
    def _finalize():
        m_lane = m_sc[...]                                        # (bn, 128)
        m_row = jnp.max(m_lane, axis=-1, keepdims=True)           # single XLU reduce
        l_row = jnp.sum(l_sc[...] * jnp.exp(m_lane - m_row),
                        axis=-1, keepdims=True)                   # single XLU reduce
        lse = m_row + jnp.log(l_row)                              # (bn, 1)
        out_ref[...] = lse - tgt_ref[...]
        # Rows >= N in the overhanging last row block are discarded by Pallas'
        # boundary-block write masking, so garbage/NaN in those rows never lands in HBM.


def ce_loss(prediction, label, *, block_n=None, block_c=None):
    """Mean cross-entropy loss == nn.CrossEntropyLoss()(prediction, label).

    prediction: (N, C) float logits (any float dtype; read natively from HBM).
    label:      (N,)   integer class indices in [0, C).
    """
    n, c = prediction.shape
    itemsize = jnp.dtype(prediction.dtype).itemsize
    sub = {4: 8, 2: 16, 1: 32}.get(itemsize, 8)   # packed-sublane multiple per dtype

    if block_n is None:
        bn = 256
        if n <= bn:
            # Guarantee >=2 row blocks when N allows, so the "parallel" row axis can
            # shard across both TensorCores on v7x (no cost on single-TC v5e/v6e).
            bn = max(sub, _round_up(-(-n // 2), sub))
            if bn >= n:
                bn = _round_up(n, sub)
    else:
        bn = _round_up(block_n, sub)
    bn = max(bn, sub)

    if block_c is None:
        bc = min(4096, _round_up(c, 128))   # ~4 MiB/buffer at bn=256 f32
    else:
        bc = _round_up(block_c, 128)

    n_row_blocks = -(-n // bn)
    n_col_blocks = -(-c // bc)

    lab = label.astype(jnp.int32)
    # Target-class logit gathered once wrapper-side: N elements of HBM traffic,
    # removes all per-tile target-extraction work from the kernel.
    tgt = jnp.take_along_axis(prediction, lab[:, None], axis=-1).astype(jnp.float32)

    kernel = functools.partial(_ce_loss_kernel, num_classes=c)

    cost = pl.CostEstimate(
        flops=5 * n * c,
        transcendentals=n * c,
        bytes_accessed=n * c * itemsize + 3 * n * 4,
    )

    per_row = pl.pallas_call(
        kernel,
        out_shape=jax.ShapeDtypeStruct((n, 1), jnp.float32),
        grid_spec=pltpu.PrefetchScalarGridSpec(
            num_scalar_prefetch=0,
            grid=(n_row_blocks, n_col_blocks),
            in_specs=[
                pl.BlockSpec((bn, bc), lambda i, j: (i, j)),   # logits tile
                pl.BlockSpec((bn, 1), lambda i, j: (i, 0)),    # target logit
            ],
            out_specs=pl.BlockSpec((bn, 1), lambda i, j: (i, 0)),
            scratch_shapes=[
                pltpu.VMEM((bn, 128), jnp.float32),  # lane-resident running max
                pltpu.VMEM((bn, 128), jnp.float32),  # lane-resident running exp-sum
            ],
        ),
        compiler_params=pltpu.CompilerParams(
            dimension_semantics=("parallel", "arbitrary"),
            vmem_limit_bytes=32 * 1024 * 1024,
        ),
        cost_estimate=cost,
    )(prediction, tgt)

    return jnp.sum(per_row) / n


if __name__ == "__main__":
    key = jax.random.PRNGKey(0)
    k1, k2, k3, k4 = jax.random.split(key, 4)

    def reference(pred, lab):
        p = pred.astype(jnp.float32)
        return jnp.mean(
            jax.nn.logsumexp(p, axis=-1)
            - jnp.take_along_axis(p, lab[:, None], axis=-1)[:, 0]
        )

    # Small shape implied by the module's forward: batch of 8 samples, 32 classes.
    N, C = 8, 32
    prediction = jax.random.normal(k1, (N, C), dtype=jnp.float32)
    label = jax.random.randint(k2, (N,), 0, C, dtype=jnp.int32)
    loss = ce_loss(prediction, label)
    jax.block_until_ready(loss)
    ref = reference(prediction, label)
    assert jnp.allclose(loss, ref, rtol=1e-5, atol=1e-5), (loss, ref)

    # Ragged shapes exercising the full grid: multiple row & class blocks, in-kernel
    # class-column masking and row-overhang write masking (no wrapper pad anywhere).
    N2, C2 = 20, 300
    pred2 = jax.random.normal(k3, (N2, C2), dtype=jnp.float32)
    lab2 = jax.random.randint(k4, (N2,), 0, C2, dtype=jnp.int32)
    loss2 = ce_loss(pred2, lab2, block_n=8, block_c=128)
    jax.block_until_ready(loss2)
    ref2 = reference(pred2, lab2)
    assert jnp.allclose(loss2, ref2, rtol=1e-4, atol=1e-5), (loss2, ref2)

    print("KERNEL_OK")
</pallas_src>

<mosaic_0001>
module attributes {stable_mosaic.version = 11 : i64} {
  func.func @_ce_loss_kernel(%arg0: i32, %arg1: i32, %arg2: memref<8x128xf32, #tpu.memory_space<vmem>>, %arg3: memref<8x1xf32, #tpu.memory_space<vmem>>, %arg4: memref<8x1xf32, #tpu.memory_space<vmem>>, %arg5: memref<8x128xf32, #tpu.memory_space<vmem>>, %arg6: memref<8x128xf32, #tpu.memory_space<vmem>>) attributes {dimension_semantics = [#tpu.dimension_semantics<parallel>, #tpu.dimension_semantics<arbitrary>], iteration_bounds = array<i64: 1, 1>, scalar_prefetch = 0 : i64, scratch_operands = 2 : i64, tpu.core_type = #tpu.core_type<tc>, window_params = [{transform_indices = @transform_0, window_bounds = array<i64: 8, 128>}, {transform_indices = @transform_1, window_bounds = array<i64: 8, 1>}, {transform_indices = @transform_2, window_bounds = array<i64: 8, 1>}]} {
    %c0_i32 = arith.constant 0 : i32
    %0 = arith.cmpi eq, %arg1, %c0_i32 : i32
    %1 = arith.extui %0 : i1 to i32
    %c0_i32_0 = arith.constant 0 : i32
    %2 = arith.cmpi ne, %1, %c0_i32_0 : i32
    scf.if %2 {
      %cst_13 = arith.constant -1.70141173E+38 : f32
      %27 = vector.broadcast %cst_13 : f32 to vector<8x128xf32>
      %c0_14 = arith.constant 0 : index
      %c0_15 = arith.constant 0 : index
      %28 = vector.load %arg5[%c0_14, %c0_15] : memref<8x128xf32, #tpu.memory_space<vmem>>, vector<8x128xf32>
      tpu.vector_store %arg5[%c0_14, %c0_15], %27 {strides = array<i32>} : memref<8x128xf32, #tpu.memory_space<vmem>>, vector<8x128xf32>,
      %cst_16 = arith.constant 0.000000e+00 : f32
      %29 = vector.broadcast %cst_16 : f32 to vector<8x128xf32>
      %c0_17 = arith.constant 0 : index
      %c0_18 = arith.constant 0 : index
      %30 = vector.load %arg6[%c0_17, %c0_18] : memref<8x128xf32, #tpu.memory_space<vmem>>, vector<8x128xf32>
      tpu.vector_store %arg6[%c0_17, %c0_18], %29 {strides = array<i32>} : memref<8x128xf32, #tpu.memory_space<vmem>>, vector<8x128xf32>,
    } else {
    }
    %c0 = arith.constant 0 : index
    %c0_1 = arith.constant 0 : index
    %3 = vector.load %arg2[%c0, %c0_1] : memref<8x128xf32, #tpu.memory_space<vmem>>, vector<8x128xf32>
    %4 = tpu.iota {dimensions = array<i32: 1>} : vector<8x128xi32>
    %c128_i32 = arith.constant 128 : i32
    %5 = arith.muli %arg1, %c128_i32 : i32
    %c0_i32_2 = arith.constant 0 : i32
    %6 = arith.addi %5, %c0_i32_2 : i32
    %7 = vector.broadcast %6 : i32 to vector<8x128xi32>
    %8 = arith.addi %7, %4 : vector<8x128xi32>
    %c32_i32 = arith.constant 32 : i32
    %9 = vector.broadcast %c32_i32 : i32 to vector<8x128xi32>
    %10 = arith.cmpi slt, %8, %9 : vector<8x128xi32>
    %cst = arith.constant -1.70141173E+38 : f32
    %11 = vector.broadcast %cst : f32 to vector<8x128xf32>
    %12 = arith.select %10, %3, %11 : vector<8x128xi1>, vector<8x128xf32>
    %c0_3 = arith.constant 0 : index
    %c0_4 = arith.constant 0 : index
    %13 = vector.load %arg5[%c0_3, %c0_4] : memref<8x128xf32, #tpu.memory_space<vmem>>, vector<8x128xf32>
    %14 = arith.maximumf %13, %12 : vector<8x128xf32>
    %c0_5 = arith.constant 0 : index
    %c0_6 = arith.constant 0 : index
    %15 = vector.load %arg6[%c0_5, %c0_6] : memref<8x128xf32, #tpu.memory_space<vmem>>, vector<8x128xf32>
    %16 = arith.subf %13, %14 : vector<8x128xf32>
    %17 = math.exp %16 : vector<8x128xf32>
    %18 = arith.mulf %15, %17 : vector<8x128xf32>
    %19 = arith.subf %12, %14 : vector<8x128xf32>
    %20 = math.exp %19 : vector<8x128xf32>
    %21 = arith.addf %18, %20 : vector<8x128xf32>
    %c0_7 = arith.constant 0 : index
    %c0_8 = arith.constant 0 : index
    %22 = vector.load %arg5[%c0_7, %c0_8] : memref<8x128xf32, #tpu.memory_space<vmem>>, vector<8x128xf32>
    tpu.vector_store %arg5[%c0_7, %c0_8], %14 {strides = array<i32>} : memref<8x128xf32, #tpu.memory_space<vmem>>, vector<8x128xf32>,
    %c0_9 = arith.constant 0 : index
    %c0_10 = arith.constant 0 : index
    %23 = vector.load %arg6[%c0_9, %c0_10] : memref<8x128xf32, #tpu.memory_space<vmem>>, vector<8x128xf32>
    tpu.vector_store %arg6[%c0_9, %c0_10], %21 {strides = array<i32>} : memref<8x128xf32, #tpu.memory_space<vmem>>, vector<8x128xf32>,
    %c0_i32_11 = arith.constant 0 : i32
    %24 = arith.cmpi eq, %arg1, %c0_i32_11 : i32
    %25 = arith.extui %24 : i1 to i32
    %c0_i32_12 = arith.constant 0 : i32
    %26 = arith.cmpi ne, %25, %c0_i32_12 : i32
    scf.if %26 {
      %c0_13 = arith.constant 0 : index
      %c0_14 = arith.constant 0 : index
      %27 = vector.load %arg5[%c0_13, %c0_14] : memref<8x128xf32, #tpu.memory_space<vmem>>, vector<8x128xf32>
      %cst_15 = arith.constant dense<0xFF800000> : vector<8xf32>
      %28 = vector.multi_reduction <maximumf>, %27, %cst_15 [1] : vector<8x128xf32> to vector<8xf32>
      %29 = vector.shape_cast %28 : vector<8xf32> to vector<8x1xf32>
      %c0_16 = arith.constant 0 : index
      %c0_17 = arith.constant 0 : index
      %30 = vector.load %arg6[%c0_16, %c0_17] : memref<8x128xf32, #tpu.memory_space<vmem>>, vector<8x128xf32>
      %31 = vector.broadcast %29 : vector<8x1xf32> to vector<8x128xf32>
      %32 = arith.subf %27, %31 : vector<8x128xf32>
      %33 = math.exp %32 : vector<8x128xf32>
      %34 = arith.mulf %30, %33 : vector<8x128xf32>
      %cst_18 = arith.constant dense<0.000000e+00> : vector<8xf32>
      %35 = vector.multi_reduction <add>, %34, %cst_18 [1] : vector<8x128xf32> to vector<8xf32>
      %36 = vector.shape_cast %35 : vector<8xf32> to vector<8x1xf32>
      %37 = math.log %36 : vector<8x1xf32>
      %38 = arith.addf %29, %37 : vector<8x1xf32>
      %c0_19 = arith.constant 0 : index
      %c0_20 = arith.constant 0 : index
      %39 = vector.load %arg3[%c0_19, %c0_20] : memref<8x1xf32, #tpu.memory_space<vmem>>, vector<8x1xf32>
      %40 = arith.subf %38, %39 : vector<8x1xf32>
      %c0_21 = arith.constant 0 : index
      %c0_22 = arith.constant 0 : index
      %41 = vector.load %arg4[%c0_21, %c0_22] : memref<8x1xf32, #tpu.memory_space<vmem>>, vector<8x1xf32>
      tpu.vector_store %arg4[%c0_21, %c0_22], %40 {strides = array<i32>} : memref<8x1xf32, #tpu.memory_space<vmem>>, vector<8x1xf32>,
    } else {
    }
    return
  }
  func.func @transform_0(%arg0: i32, %arg1: i32) -> (i32, i32) {
    %c0_i32 = arith.constant 0 : i32
    return %arg0, %arg1 : i32, i32
  }
  func.func @transform_1(%arg0: i32, %arg1: i32) -> (i32, i32) {
    %c0_i32 = arith.constant 0 : i32
    %c0_i32_0 = arith.constant 0 : i32
    return %arg0, %c0_i32 : i32, i32
  }
  func.func @transform_2(%arg0: i32, %arg1: i32) -> (i32, i32) {
    %c0_i32 = arith.constant 0 : i32
    %c0_i32_0 = arith.constant 0 : i32
    return %arg0, %c0_i32 : i32, i32
  }
}

</mosaic_0001>

<llo_original>
// kernel: tpu_custom_call.1
$region0: #{tpu_custom_call.1}
  #allocation0 [shape = 'u32[]', space=smem, size = 0x4, offset = 0x4, fixed_abs, tag = 'smem constant byte address 0x4 - core index']
  #allocation1 [shape = 'u32[144,128]{1,0:T(1,128)}', space=vmem, size = 0x12000, scoped, tag = 'internal scratch']
  #allocation2 [shape = 'f32[8,128]{1,0:T(8,128)}', space=vmem, size = 0x1000, scoped, tag = 'scratch operand']
  #allocation3 [shape = 'f32[8,128]{1,0:T(8,128)}', space=vmem, size = 0x1000, scoped, tag = 'scratch operand']
  %s0 = inlined_call_operand.vmem [shape: f32[8,32], index: 0, kind: input, shape index: {}]
  %s1 = inlined_call_operand.vmem [shape: f32[8,1], index: 1, kind: input, shape index: {}]
  %s2 = inlined_call_operand.vmem [shape: f32[8,1], index: 2, kind: output, shape index: {}]
  %s3 = sld [smem:[#allocation0]]
  $region26: #{tpu_custom_call.1} parent=0
    _
  %s5 = ssub.s32 1, %s3
  %s6 = scalar_select 0, %s5, %s3
  // Predicated region
  $region2: #{tpu_custom_call.1} parent=0 // pred_check
    _
  $region3: #{tpu_custom_call.1} parent=0 // pred_check_branch
    %8 = sbr.rel (0) target = $region5
  $region4: #{tpu_custom_call.1} parent=0 // pred_region
    _
  $region5: #{tpu_custom_call.1} parent=0 // pred_fallthru
    _
  // Predicated region
  $region6: #{tpu_custom_call.1} parent=0 // pred_check
    _
  $region7: #{tpu_custom_call.1} parent=0 // pred_check_branch
    %10 = sbr.rel (0) target = $region9
  $region8: #{tpu_custom_call.1} parent=0 // pred_region
    _
  $region9: #{tpu_custom_call.1} parent=0 // pred_fallthru
    _
  %p11 = scmp.eq.s32.totalorder 0, 0
  // Predicated region
  $region10: #{tpu_custom_call.1} parent=0 // pred_check
    %p12 = pneg %p11
  $region11: #{tpu_custom_call.1} parent=0 // pred_check_branch
    %14 = sbr.rel (%p12) target = $region13
  $region12: #{tpu_custom_call.1} parent=0 // pred_region
    %15 = vst [vmem:[#allocation2] sm:$0xff] -1.7014117e+38
    %16 = vst [vmem:[#allocation3] sm:$0xff] 0.0
  $region13: #{tpu_custom_call.1} parent=0 // pred_fallthru
    _
  %v17 = vld [vmem:[%s0] sm:$0xff]
  %v18 = vlaneseq
  %v19 = vand.u32 %v18, 127
  %s20 = smul.u32 0, 128
  %v21 = vstv %s20
  %v22 = vadd.s32 %v21, %v19
  %vm23 = vcmp.lt.s32.totalorder %v22, 32
  %v24 = vsel %vm23, %v17, -1.7014117e+38
  %v25 = vld [vmem:[#allocation2] sm:$0xff]
  %v26 = vmax.f32 %v25, %v24
  %v27 = vld [vmem:[#allocation3] sm:$0xff]
  %v28 = vsub.f32 %v25, %v26
  %v29 = vmul.f32 %v28, 1.442695
  %v30 = vpow.pop %v29
  %v31 = vmul.f32 %v27, %v30
  %v32 = vsub.f32 %v24, %v26
  %v33 = vmul.f32 %v32, 1.442695
  %v34 = vpow.pop %v33
  %v35 = vadd.f32 %v31, %v34
  %36 = vst [vmem:[#allocation2] sm:$0xff] %v26
  %37 = vst [vmem:[#allocation3] sm:$0xff] %v35
  // Predicated region
  $region14: #{tpu_custom_call.1} parent=0 // pred_check
    %p38 = pneg %p11
  $region15: #{tpu_custom_call.1} parent=0 // pred_check_branch
    %40 = sbr.rel (%p38) target = $region17
  $region16: #{tpu_custom_call.1} parent=0 // pred_region
    %v41 = vld [vmem:[#allocation2] sm:$0xff]
    %42 = vmax.xlane.f32.xlu0 %v41
    %v43 = vpop.xlane.xlu0 %42
    %v44 = vld [vmem:[#allocation3] sm:$0xff]
    %v45 = vsub.f32 %v41, %v43
    %v46 = vmul.f32 %v45, 1.442695
    %v47 = vpow.pop %v46
    %v48 = vmul.f32 %v44, %v47
    %49 = vadd.xlane.f32.xlu0 %v48
    %v50 = vpop.xlane.xlu0 %49
    %v51 = vlog2.pop %v50
    %v52 = vmul.f32 %v51, 0.6931472
    %v53 = vadd.f32 %v43, %v52
    %v54 = vld [vmem:[%s1] sm:$0xff]
    %v55 = vsub.f32 %v53, %v54
    %vm56 = vcmask 7168
    %57 = vst.msk [vmem:[%s2] sm:$0xff] %vm56, %v55
  $region17: #{tpu_custom_call.1} parent=0 // pred_fallthru
    _
  // Predicated region
  $region18: #{tpu_custom_call.1} parent=0 // pred_check
    _
  $region19: #{tpu_custom_call.1} parent=0 // pred_check_branch
    %59 = sbr.rel (0) target = $region21
  $region20: #{tpu_custom_call.1} parent=0 // pred_region
    _
  $region21: #{tpu_custom_call.1} parent=0 // pred_fallthru
    _
  // Predicated region
  $region22: #{tpu_custom_call.1} parent=0 // pred_check
    _
  $region23: #{tpu_custom_call.1} parent=0 // pred_check_branch
    %61 = sbr.rel (0) target = $region25
  $region24: #{tpu_custom_call.1} parent=0 // pred_region
    _
  $region25: #{tpu_custom_call.1} parent=0 // pred_fallthru
    _

</llo_original>
